<compile_context>
chip_gen: v5e
topology: v5e:2x2
jax: 0.10.0
libtpu: 0.0.40
codegen_flags: <defaults>
</compile_context>

<pallas_src>
import functools

import numpy as np
import jax
import jax.numpy as jnp
from jax import lax
from jax.experimental import pallas as pl
from jax.experimental.pallas import tpu as pltpu


def _round_up(v, m):
    return ((v + m - 1) // m) * m


def _unsup_loss_kernel(x_ref, y0_ref, y1_ref, out_ref, dmin_ref, *,
                       thres_static, thres_dist, margin):
    # x_ref  : (1, n_tile, 3)      t = T-2 xyz slab chunk (sentinel-padded rows)
    # y*_ref : (1, Ty, 3, m_tile)  lane-dense predictions (pre-transposed)
    # out_ref: (1, 1, 128)         lanes 0..3 = dyn_sum, dyn_cnt, stat_sum, stat_cnt
    # dmin_ref: (8, m_tile)        running min of squared distances (VMEM scratch)
    n_idx = pl.program_id(2)
    n_last = pl.num_programs(2) - 1

    Ty = y0_ref.shape[1]
    m_tile = y0_ref.shape[3]
    n_tile = x_ref.shape[1]

    @pl.when(n_idx == 0)
    def _init():
        dmin_ref[...] = jnp.full_like(dmin_ref, 1e30)

    # y_hat0[:, 0] coordinates, already lane-dense (3, m_tile): no transpose.
    y0_t0 = y0_ref[0, 0, :, :].astype(jnp.float32)
    y0x = y0_t0[0:1, :]
    y0y = y0_t0[1:2, :]
    y0z = y0_t0[2:3, :]

    # ---- Chamfer dist2: chunked running-min over this x tile ----------------
    # Never materializes the (N, M) matrix.  Padded x rows hold a BIG sentinel
    # (wrapper-side), so no per-chunk masking is needed here.
    # NOTE: xc[:, c:c+1] - y0c is an (8,1)x(1,M) lane broadcast; expected to
    # lower to a single splat per coordinate (check bundle dump if XLU-bound).
    def dist_body(i, acc):
        start = pl.multiple_of(i * 8, 8)
        xc = x_ref[0, pl.ds(start, 8), :].astype(jnp.float32)      # (8, 3)
        dx = xc[:, 0:1] - y0x
        d2 = dx * dx
        dy = xc[:, 1:2] - y0y
        d2 = d2 + dy * dy
        dz = xc[:, 2:3] - y0z
        d2 = d2 + dz * dz
        return jnp.minimum(acc, d2)

    n_chunks = n_tile // 8
    dmin_ref[...] = lax.fori_loop(0, n_chunks, dist_body, dmin_ref[...],
                                  unroll=min(8, n_chunks))

    # ---- epilogue: masks + both loss accumulations, once per (b, m) tile ----
    @pl.when(n_idx == n_last)
    def _epilogue():
        dist2 = jnp.min(dmin_ref[...], axis=0, keepdims=True)       # (1, m_tile)
        mask_pos = (dist2 < thres_dist).astype(jnp.float32)
        mask_neg = (dist2 > thres_static).astype(jnp.float32)

        dyn_sum = jnp.zeros((1, 1), jnp.float32)
        dyn_cnt = jnp.zeros((1, 1), jnp.float32)
        stat_sum = jnp.zeros((1, 1), jnp.float32)
        stat_cnt = jnp.zeros((1, 1), jnp.float32)

        for t in range(Ty):  # Ty is small -> static unroll
            y0T = y0_ref[0, t, :, :].astype(jnp.float32)            # (3, m_tile)
            y1T = y1_ref[0, t, :, :].astype(jnp.float32)
            diff = y1T - y0T

            # dynamic branch: per-point L2 norm of the masked displacement
            dyn = diff * mask_pos                                   # (3, m_tile)
            nrm = jnp.sqrt(jnp.sum(dyn * dyn, axis=0, keepdims=True))
            sel_d = nrm > 0.0
            hinge = jnp.maximum(margin - nrm, 0.0)                  # relu(0.05 - norm)
            dyn_sum = dyn_sum + jnp.sum(jnp.where(sel_d, hinge, 0.0),
                                        keepdims=True)
            dyn_cnt = dyn_cnt + jnp.sum(sel_d.astype(jnp.float32),
                                        keepdims=True)

            # static branch: strictly-positive masked components, mse vs zero
            stat = diff * mask_neg                                  # (3, m_tile)
            sel_s = stat > 0.0
            stat_sum = stat_sum + jnp.sum(jnp.where(sel_s, stat * stat, 0.0),
                                          keepdims=True)
            stat_cnt = stat_cnt + jnp.sum(sel_s.astype(jnp.float32),
                                          keepdims=True)

        # Pack the four scalars into one lane-dense (1, 128) row.
        lane = lax.broadcasted_iota(jnp.int32, (1, 128), 1)
        packed = (jnp.where(lane == 0, dyn_sum, 0.0)
                  + jnp.where(lane == 1, dyn_cnt, 0.0)
                  + jnp.where(lane == 2, stat_sum, 0.0)
                  + jnp.where(lane == 3, stat_cnt, 0.0))
        out_ref[...] = packed.reshape(1, 1, 128)


def unsup_loss(x, y_hat0, y_hat1, thres_static=0.2, thres_dist=0.1,
               m_tile_max=1024, n_tile_max=512):
    """x: (B, T, N, C>=3); y_hat0/y_hat1: (B, Ty, M, 3)  (PyTorch layouts)."""
    B, T, N, C = x.shape
    _, Ty, M, three = y_hat0.shape
    assert three == 3 and C >= 3 and T >= 2

    # x: only the t = T-2 xyz slab is needed.  Pad N with a BIG sentinel so the
    # padded rows can never win the running min (zero padding would corrupt
    # the masks).  No dtype cast here: native dtype is widened in-kernel.
    x3 = x[:, T - 2, :, :3]                                          # (B, N, 3)
    n_tile = min(n_tile_max, _round_up(N, 8))
    n_pad = _round_up(N, n_tile)
    if n_pad != N:
        x3 = jnp.pad(x3, ((0, 0), (0, n_pad - N), (0, 0)),
                     constant_values=1e9)
    num_n_tiles = n_pad // n_tile

    # y: lane-dense (B, Ty, 3, M) layout; zero-padded M points have y1-y0 == 0
    # and therefore never pass the >0 selections, so padding is semantically free.
    y0 = jnp.transpose(y_hat0, (0, 1, 3, 2))                         # (B, Ty, 3, M)
    y1 = jnp.transpose(y_hat1, (0, 1, 3, 2))
    if M <= m_tile_max:
        m_tile = M
    else:
        m_tile = m_tile_max                                          # mult of 8 & 128
        m_pad = _round_up(M, m_tile)
        if m_pad != M:
            pad = ((0, 0), (0, 0), (0, 0), (0, m_pad - M))
            y0 = jnp.pad(y0, pad)
            y1 = jnp.pad(y1, pad)
    num_m_tiles = y0.shape[3] // m_tile

    kernel = functools.partial(_unsup_loss_kernel,
                               thres_static=float(thres_static),
                               thres_dist=float(thres_dist),
                               margin=0.05)

    acc = pl.pallas_call(
        kernel,
        out_shape=jax.ShapeDtypeStruct((B, num_m_tiles, 128), jnp.float32),
        grid=(B, num_m_tiles, num_n_tiles),
        in_specs=[
            pl.BlockSpec((1, n_tile, 3), lambda b, m, n: (b, n, 0)),
            pl.BlockSpec((1, Ty, 3, m_tile), lambda b, m, n: (b, 0, 0, m)),
            pl.BlockSpec((1, Ty, 3, m_tile), lambda b, m, n: (b, 0, 0, m)),
        ],
        out_specs=pl.BlockSpec((1, 1, 128), lambda b, m, n: (b, m, 0)),
        scratch_shapes=[pltpu.VMEM((8, m_tile), jnp.float32)],
        compiler_params=pltpu.CompilerParams(
            dimension_semantics=("parallel", "parallel", "arbitrary"),
            vmem_limit_bytes=32 * 1024 * 1024),
    )(x3, y0, y1)

    totals = jnp.sum(acc, axis=(0, 1))               # (128,), lanes 0..3 used
    # mean of empty selection -> 0/0 -> NaN, matching torch .mean() of empty.
    loss_dynamic = totals[0] / totals[1]
    loss_static = totals[2] / totals[3]
    return loss_dynamic, loss_static


def reference_unsup_loss(x, y_hat0, y_hat1, thres_static=0.2, thres_dist=0.1):
    """Pure-JAX reference mirroring the PyTorch forward (for validation)."""
    x_t0 = x[:, -2, :, :3].astype(jnp.float32)                       # (B, N, 3)
    y0 = y_hat0[:, 0].astype(jnp.float32)                            # (B, M, 3)
    d2 = jnp.sum((y0[:, :, None, :] - x_t0[:, None, :, :]) ** 2, axis=-1)  # (B, M, N)
    dist2 = jnp.min(d2, axis=-1)                                     # (B, M)
    mask_pos = (dist2 < thres_dist)[:, None, :, None]
    mask_neg = (dist2 > thres_static)[:, None, :, None]
    diff = (y_hat1 - y_hat0).astype(jnp.float32)
    dyn = diff * mask_pos
    norm = jnp.sqrt(jnp.sum(dyn * dyn, axis=-1))
    sel_d = norm > 0
    loss_dyn = (jnp.sum(jnp.where(sel_d, jnp.maximum(0.05 - norm, 0.0), 0.0))
                / jnp.sum(sel_d))
    stat = diff * mask_neg
    sel_s = stat > 0
    loss_stat = jnp.sum(jnp.where(sel_s, stat * stat, 0.0)) / jnp.sum(sel_s)
    return loss_dyn, loss_stat


if __name__ == "__main__":
    key = jax.random.PRNGKey(0)
    kx, kn, kf, kd, ke = jax.random.split(key, 5)

    B, T, N, C = 2, 4, 16, 4     # x: batch, time, points, channels (xyz + extra)
    Ty, M = 2, 16                # predictions: batch, pred-time, points, xyz

    x = jax.random.uniform(kx, (B, T, N, C), jnp.float32)
    x_pts = x[:, -2, :, :3]                                          # (B, N, 3)

    # Predicted cloud: half the points near the input cloud (-> mask_dist_pos),
    # half far away (-> mask_dist_neg), so both losses are exercised.
    near = x_pts[:, : M // 2, :] + 0.02 * jax.random.normal(kn, (B, M // 2, 3), jnp.float32)
    far = x_pts[:, : M - M // 2, :] + 3.0 + jax.random.uniform(kf, (B, M - M // 2, 3), jnp.float32)
    y0_pts = jnp.concatenate([near, far], axis=1)                    # (B, M, 3)

    y_hat0 = y0_pts[:, None, :, :] + 0.005 * jax.random.normal(kd, (B, Ty, M, 3), jnp.float32)
    y_hat1 = y_hat0 + 0.04 * jax.random.normal(ke, (B, Ty, M, 3), jnp.float32)

    loss_dyn, loss_stat = unsup_loss(x, y_hat0, y_hat1)
    jax.block_until_ready((loss_dyn, loss_stat))

    ref_dyn, ref_stat = reference_unsup_loss(x, y_hat0, y_hat1)
    np.testing.assert_allclose(np.asarray(loss_dyn), np.asarray(ref_dyn),
                               rtol=1e-5, atol=1e-6)
    np.testing.assert_allclose(np.asarray(loss_stat), np.asarray(ref_stat),
                               rtol=1e-5, atol=1e-6)

    print("KERNEL_OK")
</pallas_src>

<mosaic_0001>
module attributes {stable_mosaic.version = 11 : i64} {
  func.func @_unsup_loss_kernel(%arg0: i32, %arg1: i32, %arg2: i32, %arg3: memref<1x16x3xf32, #tpu.memory_space<vmem>>, %arg4: memref<1x2x3x16xf32, #tpu.memory_space<vmem>>, %arg5: memref<1x2x3x16xf32, #tpu.memory_space<vmem>>, %arg6: memref<1x1x128xf32, #tpu.memory_space<vmem>>, %arg7: memref<8x16xf32, #tpu.memory_space<vmem>>) attributes {dimension_semantics = [#tpu.dimension_semantics<parallel>, #tpu.dimension_semantics<parallel>, #tpu.dimension_semantics<arbitrary>], iteration_bounds = array<i64: 2, 1, 1>, scalar_prefetch = 0 : i64, scratch_operands = 1 : i64, tpu.core_type = #tpu.core_type<tc>, window_params = [{transform_indices = @transform_0, window_bounds = array<i64: 1, 16, 3>}, {transform_indices = @transform_1, window_bounds = array<i64: 1, 2, 3, 16>}, {transform_indices = @transform_2, window_bounds = array<i64: 1, 2, 3, 16>}, {transform_indices = @transform_3, window_bounds = array<i64: 1, 1, 128>}]} {
    %c0_i32 = arith.constant 0 : i32
    %0 = arith.cmpi eq, %arg2, %c0_i32 : i32
    %1 = arith.extui %0 : i1 to i32
    %c0_i32_0 = arith.constant 0 : i32
    %2 = arith.cmpi ne, %1, %c0_i32_0 : i32
    scf.if %2 {
      %cst = arith.constant 1.000000e+30 : f32
      %59 = vector.broadcast %cst : f32 to vector<8x16xf32>
      %c0_16 = arith.constant 0 : index
      %c0_17 = arith.constant 0 : index
      %60 = vector.load %arg7[%c0_16, %c0_17] : memref<8x16xf32, #tpu.memory_space<vmem>>, vector<8x16xf32>
      tpu.vector_store %arg7[%c0_16, %c0_17], %59 {strides = array<i32>} : memref<8x16xf32, #tpu.memory_space<vmem>>, vector<8x16xf32>,
    } else {
    }
    %c0 = arith.constant 0 : index
    %c0_1 = arith.constant 0 : index
    %c0_2 = arith.constant 0 : index
    %c0_3 = arith.constant 0 : index
    %3 = vector.load %arg4[%c0, %c0_1, %c0_2, %c0_3] : memref<1x2x3x16xf32, #tpu.memory_space<vmem>>, vector<1x1x3x16xf32>
    %4 = vector.shape_cast %3 : vector<1x1x3x16xf32> to vector<3x16xf32>
    %5 = vector.extract_strided_slice %4 {offsets = [0, 0], sizes = [1, 16], strides = [1, 1]} : vector<3x16xf32> to vector<1x16xf32>
    %6 = vector.extract_strided_slice %4 {offsets = [1, 0], sizes = [1, 16], strides = [1, 1]} : vector<3x16xf32> to vector<1x16xf32>
    %7 = vector.extract_strided_slice %4 {offsets = [2, 0], sizes = [1, 16], strides = [1, 1]} : vector<3x16xf32> to vector<1x16xf32>
    %c0_4 = arith.constant 0 : index
    %c0_5 = arith.constant 0 : index
    %8 = vector.load %arg7[%c0_4, %c0_5] : memref<8x16xf32, #tpu.memory_space<vmem>>, vector<8x16xf32>
    %c0_i32_6 = arith.constant 0 : i32
    %c8_i32 = arith.constant 8 : i32
    %9 = arith.muli %c0_i32_6, %c8_i32 : i32
    %10 = tpu.assume_multiple %9, 8 : i32
    %c0_7 = arith.constant 0 : index
    %11 = arith.index_cast %10 : i32 to index
    %c0_8 = arith.constant 0 : index
    %12 = vector.load %arg3[%c0_7, %11, %c0_8] : memref<1x16x3xf32, #tpu.memory_space<vmem>>, vector<1x8x3xf32>
    %13 = vector.shape_cast %12 : vector<1x8x3xf32> to vector<8x3xf32>
    %14 = vector.extract_strided_slice %13 {offsets = [0, 0], sizes = [8, 1], strides = [1, 1]} : vector<8x3xf32> to vector<8x1xf32>
    %15 = vector.broadcast %14 : vector<8x1xf32> to vector<8x16xf32>
    %16 = vector.broadcast %5 : vector<1x16xf32> to vector<8x16xf32>
    %17 = arith.subf %15, %16 : vector<8x16xf32>
    %18 = arith.mulf %17, %17 : vector<8x16xf32>
    %19 = vector.extract_strided_slice %13 {offsets = [0, 1], sizes = [8, 1], strides = [1, 1]} : vector<8x3xf32> to vector<8x1xf32>
    %20 = vector.broadcast %19 : vector<8x1xf32> to vector<8x16xf32>
    %21 = vector.broadcast %6 : vector<1x16xf32> to vector<8x16xf32>
    %22 = arith.subf %20, %21 : vector<8x16xf32>
    %23 = arith.mulf %22, %22 : vector<8x16xf32>
    %24 = arith.addf %18, %23 : vector<8x16xf32>
    %25 = vector.extract_strided_slice %13 {offsets = [0, 2], sizes = [8, 1], strides = [1, 1]} : vector<8x3xf32> to vector<8x1xf32>
    %26 = vector.broadcast %25 : vector<8x1xf32> to vector<8x16xf32>
    %27 = vector.broadcast %7 : vector<1x16xf32> to vector<8x16xf32>
    %28 = arith.subf %26, %27 : vector<8x16xf32>
    %29 = arith.mulf %28, %28 : vector<8x16xf32>
    %30 = arith.addf %24, %29 : vector<8x16xf32>
    %31 = arith.minimumf %8, %30 : vector<8x16xf32>
    %c1_i32 = arith.constant 1 : i32
    %c8_i32_9 = arith.constant 8 : i32
    %32 = arith.muli %c1_i32, %c8_i32_9 : i32
    %33 = tpu.assume_multiple %32, 8 : i32
    %c0_10 = arith.constant 0 : index
    %34 = arith.index_cast %33 : i32 to index
    %c0_11 = arith.constant 0 : index
    %35 = vector.load %arg3[%c0_10, %34, %c0_11] : memref<1x16x3xf32, #tpu.memory_space<vmem>>, vector<1x8x3xf32>
    %36 = vector.shape_cast %35 : vector<1x8x3xf32> to vector<8x3xf32>
    %37 = vector.extract_strided_slice %36 {offsets = [0, 0], sizes = [8, 1], strides = [1, 1]} : vector<8x3xf32> to vector<8x1xf32>
    %38 = vector.broadcast %37 : vector<8x1xf32> to vector<8x16xf32>
    %39 = vector.broadcast %5 : vector<1x16xf32> to vector<8x16xf32>
    %40 = arith.subf %38, %39 : vector<8x16xf32>
    %41 = arith.mulf %40, %40 : vector<8x16xf32>
    %42 = vector.extract_strided_slice %36 {offsets = [0, 1], sizes = [8, 1], strides = [1, 1]} : vector<8x3xf32> to vector<8x1xf32>
    %43 = vector.broadcast %42 : vector<8x1xf32> to vector<8x16xf32>
    %44 = vector.broadcast %6 : vector<1x16xf32> to vector<8x16xf32>
    %45 = arith.subf %43, %44 : vector<8x16xf32>
    %46 = arith.mulf %45, %45 : vector<8x16xf32>
    %47 = arith.addf %41, %46 : vector<8x16xf32>
    %48 = vector.extract_strided_slice %36 {offsets = [0, 2], sizes = [8, 1], strides = [1, 1]} : vector<8x3xf32> to vector<8x1xf32>
    %49 = vector.broadcast %48 : vector<8x1xf32> to vector<8x16xf32>
    %50 = vector.broadcast %7 : vector<1x16xf32> to vector<8x16xf32>
    %51 = arith.subf %49, %50 : vector<8x16xf32>
    %52 = arith.mulf %51, %51 : vector<8x16xf32>
    %53 = arith.addf %47, %52 : vector<8x16xf32>
    %54 = arith.minimumf %31, %53 : vector<8x16xf32>
    %c2_i32 = arith.constant 2 : i32
    %c0_12 = arith.constant 0 : index
    %c0_13 = arith.constant 0 : index
    %55 = vector.load %arg7[%c0_12, %c0_13] : memref<8x16xf32, #tpu.memory_space<vmem>>, vector<8x16xf32>
    tpu.vector_store %arg7[%c0_12, %c0_13], %54 {strides = array<i32>} : memref<8x16xf32, #tpu.memory_space<vmem>>, vector<8x16xf32>,
    %c0_i32_14 = arith.constant 0 : i32
    %56 = arith.cmpi eq, %arg2, %c0_i32_14 : i32
    %57 = arith.extui %56 : i1 to i32
    %c0_i32_15 = arith.constant 0 : i32
    %58 = arith.cmpi ne, %57, %c0_i32_15 : i32
    scf.if %58 {
      %c0_16 = arith.constant 0 : index
      %c0_17 = arith.constant 0 : index
      %59 = vector.load %arg7[%c0_16, %c0_17] : memref<8x16xf32, #tpu.memory_space<vmem>>, vector<8x16xf32>
      %cst = arith.constant dense<0x7F800000> : vector<16xf32>
      %60 = vector.multi_reduction <minimumf>, %59, %cst [0] : vector<8x16xf32> to vector<16xf32>
      %61 = vector.shape_cast %60 : vector<16xf32> to vector<1x16xf32>
      %cst_18 = arith.constant 1.000000e-01 : f32
      %62 = vector.broadcast %cst_18 : f32 to vector<1x16xf32>
      %63 = arith.cmpf olt, %61, %62 : vector<1x16xf32>
      %64 = arith.extui %63 : vector<1x16xi1> to vector<1x16xi32>
      %65 = arith.sitofp %64 : vector<1x16xi32> to vector<1x16xf32>
      %cst_19 = arith.constant 2.000000e-01 : f32
      %66 = vector.broadcast %cst_19 : f32 to vector<1x16xf32>
      %67 = arith.cmpf ogt, %61, %66 : vector<1x16xf32>
      %68 = arith.extui %67 : vector<1x16xi1> to vector<1x16xi32>
      %69 = arith.sitofp %68 : vector<1x16xi32> to vector<1x16xf32>
      %cst_20 = arith.constant 0.000000e+00 : f32
      %70 = vector.broadcast %cst_20 : f32 to vector<1x1xf32>
      %cst_21 = arith.constant 0.000000e+00 : f32
      %71 = vector.broadcast %cst_21 : f32 to vector<1x1xf32>
      %cst_22 = arith.constant 0.000000e+00 : f32
      %72 = vector.broadcast %cst_22 : f32 to vector<1x1xf32>
      %cst_23 = arith.constant 0.000000e+00 : f32
      %73 = vector.broadcast %cst_23 : f32 to vector<1x1xf32>
      %c0_24 = arith.constant 0 : index
      %c0_25 = arith.constant 0 : index
      %c0_26 = arith.constant 0 : index
      %c0_27 = arith.constant 0 : index
      %74 = vector.load %arg4[%c0_24, %c0_25, %c0_26, %c0_27] : memref<1x2x3x16xf32, #tpu.memory_space<vmem>>, vector<1x1x3x16xf32>
      %75 = vector.shape_cast %74 : vector<1x1x3x16xf32> to vector<3x16xf32>
      %c0_28 = arith.constant 0 : index
      %c0_29 = arith.constant 0 : index
      %c0_30 = arith.constant 0 : index
      %c0_31 = arith.constant 0 : index
      %76 = vector.load %arg5[%c0_28, %c0_29, %c0_30, %c0_31] : memref<1x2x3x16xf32, #tpu.memory_space<vmem>>, vector<1x1x3x16xf32>
      %77 = vector.shape_cast %76 : vector<1x1x3x16xf32> to vector<3x16xf32>
      %78 = arith.subf %77, %75 : vector<3x16xf32>
      %79 = vector.broadcast %65 : vector<1x16xf32> to vector<3x16xf32>
      %80 = arith.mulf %78, %79 : vector<3x16xf32>
      %81 = arith.mulf %80, %80 : vector<3x16xf32>
      %cst_32 = arith.constant dense<0.000000e+00> : vector<16xf32>
      %82 = vector.multi_reduction <add>, %81, %cst_32 [0] : vector<3x16xf32> to vector<16xf32>
      %83 = vector.shape_cast %82 : vector<16xf32> to vector<1x16xf32>
      %84 = math.sqrt %83 : vector<1x16xf32>
      %cst_33 = arith.constant 0.000000e+00 : f32
      %85 = vector.broadcast %cst_33 : f32 to vector<1x16xf32>
      %86 = arith.cmpf ogt, %84, %85 : vector<1x16xf32>
      %cst_34 = arith.constant 5.000000e-02 : f32
      %87 = vector.broadcast %cst_34 : f32 to vector<1x16xf32>
      %88 = arith.subf %87, %84 : vector<1x16xf32>
      %cst_35 = arith.constant 0.000000e+00 : f32
      %89 = vector.broadcast %cst_35 : f32 to vector<1x16xf32>
      %90 = arith.maximumf %88, %89 : vector<1x16xf32>
      %cst_36 = arith.constant 0.000000e+00 : f32
      %91 = vector.broadcast %cst_36 : f32 to vector<1x16xf32>
      %92 = arith.select %86, %90, %91 : vector<1x16xi1>, vector<1x16xf32>
      %93 = vector.shape_cast %92 : vector<1x16xf32> to vector<1x1x16xf32>
      %cst_37 = arith.constant dense<0.000000e+00> : vector<1xf32>
      %94 = vector.multi_reduction <add>, %93, %cst_37 [1, 2] : vector<1x1x16xf32> to vector<1xf32>
      %95 = vector.shape_cast %94 : vector<1xf32> to vector<1x1x1xf32>
      %96 = vector.extract %95[0, 0, 0] : f32 from vector<1x1x1xf32>
      %97 = vector.broadcast %96 : f32 to vector<1x1xf32>
      %98 = arith.addf %70, %97 : vector<1x1xf32>
      %99 = arith.extui %86 : vector<1x16xi1> to vector<1x16xi32>
      %100 = arith.sitofp %99 : vector<1x16xi32> to vector<1x16xf32>
      %101 = vector.shape_cast %100 : vector<1x16xf32> to vector<1x1x16xf32>
      %cst_38 = arith.constant dense<0.000000e+00> : vector<1xf32>
      %102 = vector.multi_reduction <add>, %101, %cst_38 [1, 2] : vector<1x1x16xf32> to vector<1xf32>
      %103 = vector.shape_cast %102 : vector<1xf32> to vector<1x1x1xf32>
      %104 = vector.extract %103[0, 0, 0] : f32 from vector<1x1x1xf32>
      %105 = vector.broadcast %104 : f32 to vector<1x1xf32>
      %106 = arith.addf %71, %105 : vector<1x1xf32>
      %107 = vector.broadcast %69 : vector<1x16xf32> to vector<3x16xf32>
      %108 = arith.mulf %78, %107 : vector<3x16xf32>
      %cst_39 = arith.constant 0.000000e+00 : f32
      %109 = vector.broadcast %cst_39 : f32 to vector<3x16xf32>
      %110 = arith.cmpf ogt, %108, %109 : vector<3x16xf32>
      %111 = arith.mulf %108, %108 : vector<3x16xf32>
      %cst_40 = arith.constant 0.000000e+00 : f32
      %112 = vector.broadcast %cst_40 : f32 to vector<3x16xf32>
      %113 = arith.select %110, %111, %112 : vector<3x16xi1>, vector<3x16xf32>
      %114 = vector.shape_cast %113 : vector<3x16xf32> to vector<1x3x16xf32>
      %cst_41 = arith.constant dense<0.000000e+00> : vector<1xf32>
      %115 = vector.multi_reduction <add>, %114, %cst_41 [1, 2] : vector<1x3x16xf32> to vector<1xf32>
      %116 = vector.shape_cast %115 : vector<1xf32> to vector<1x1x1xf32>
      %117 = vector.extract %116[0, 0, 0] : f32 from vector<1x1x1xf32>
      %118 = vector.broadcast %117 : f32 to vector<1x1xf32>
      %119 = arith.addf %72, %118 : vector<1x1xf32>
      %120 = arith.extui %110 : vector<3x16xi1> to vector<3x16xi32>
      %121 = arith.sitofp %120 : vector<3x16xi32> to vector<3x16xf32>
      %122 = vector.shape_cast %121 : vector<3x16xf32> to vector<1x3x16xf32>
      %cst_42 = arith.constant dense<0.000000e+00> : vector<1xf32>
      %123 = vector.multi_reduction <add>, %122, %cst_42 [1, 2] : vector<1x3x16xf32> to vector<1xf32>
      %124 = vector.shape_cast %123 : vector<1xf32> to vector<1x1x1xf32>
      %125 = vector.extract %124[0, 0, 0] : f32 from vector<1x1x1xf32>
      %126 = vector.broadcast %125 : f32 to vector<1x1xf32>
      %127 = arith.addf %73, %126 : vector<1x1xf32>
      %c0_43 = arith.constant 0 : index
      %c1 = arith.constant 1 : index
      %c0_44 = arith.constant 0 : index
      %c0_45 = arith.constant 0 : index
      %128 = vector.load %arg4[%c0_43, %c1, %c0_44, %c0_45] : memref<1x2x3x16xf32, #tpu.memory_space<vmem>>, vector<1x1x3x16xf32>
      %129 = vector.shape_cast %128 : vector<1x1x3x16xf32> to vector<3x16xf32>
      %c0_46 = arith.constant 0 : index
      %c1_47 = arith.constant 1 : index
      %c0_48 = arith.constant 0 : index
      %c0_49 = arith.constant 0 : index
      %130 = vector.load %arg5[%c0_46, %c1_47, %c0_48, %c0_49] : memref<1x2x3x16xf32, #tpu.memory_space<vmem>>, vector<1x1x3x16xf32>
      %131 = vector.shape_cast %130 : vector<1x1x3x16xf32> to vector<3x16xf32>
      %132 = arith.subf %131, %129 : vector<3x16xf32>
      %133 = vector.broadcast %65 : vector<1x16xf32> to vector<3x16xf32>
      %134 = arith.mulf %132, %133 : vector<3x16xf32>
      %135 = arith.mulf %134, %134 : vector<3x16xf32>
      %cst_50 = arith.constant dense<0.000000e+00> : vector<16xf32>
      %136 = vector.multi_reduction <add>, %135, %cst_50 [0] : vector<3x16xf32> to vector<16xf32>
      %137 = vector.shape_cast %136 : vector<16xf32> to vector<1x16xf32>
      %138 = math.sqrt %137 : vector<1x16xf32>
      %cst_51 = arith.constant 0.000000e+00 : f32
      %139 = vector.broadcast %cst_51 : f32 to vector<1x16xf32>
      %140 = arith.cmpf ogt, %138, %139 : vector<1x16xf32>
      %cst_52 = arith.constant 5.000000e-02 : f32
      %141 = vector.broadcast %cst_52 : f32 to vector<1x16xf32>
      %142 = arith.subf %141, %138 : vector<1x16xf32>
      %cst_53 = arith.constant 0.000000e+00 : f32
      %143 = vector.broadcast %cst_53 : f32 to vector<1x16xf32>
      %144 = arith.maximumf %142, %143 : vector<1x16xf32>
      %cst_54 = arith.constant 0.000000e+00 : f32
      %145 = vector.broadcast %cst_54 : f32 to vector<1x16xf32>
      %146 = arith.select %140, %144, %145 : vector<1x16xi1>, vector<1x16xf32>
      %147 = vector.shape_cast %146 : vector<1x16xf32> to vector<1x1x16xf32>
      %cst_55 = arith.constant dense<0.000000e+00> : vector<1xf32>
      %148 = vector.multi_reduction <add>, %147, %cst_55 [1, 2] : vector<1x1x16xf32> to vector<1xf32>
      %149 = vector.shape_cast %148 : vector<1xf32> to vector<1x1x1xf32>
      %150 = vector.extract %149[0, 0, 0] : f32 from vector<1x1x1xf32>
      %151 = vector.broadcast %150 : f32 to vector<1x1xf32>
      %152 = arith.addf %98, %151 : vector<1x1xf32>
      %153 = arith.extui %140 : vector<1x16xi1> to vector<1x16xi32>
      %154 = arith.sitofp %153 : vector<1x16xi32> to vector<1x16xf32>
      %155 = vector.shape_cast %154 : vector<1x16xf32> to vector<1x1x16xf32>
      %cst_56 = arith.constant dense<0.000000e+00> : vector<1xf32>
      %156 = vector.multi_reduction <add>, %155, %cst_56 [1, 2] : vector<1x1x16xf32> to vector<1xf32>
      %157 = vector.shape_cast %156 : vector<1xf32> to vector<1x1x1xf32>
      %158 = vector.extract %157[0, 0, 0] : f32 from vector<1x1x1xf32>
      %159 = vector.broadcast %158 : f32 to vector<1x1xf32>
      %160 = arith.addf %106, %159 : vector<1x1xf32>
      %161 = vector.broadcast %69 : vector<1x16xf32> to vector<3x16xf32>
      %162 = arith.mulf %132, %161 : vector<3x16xf32>
      %cst_57 = arith.constant 0.000000e+00 : f32
      %163 = vector.broadcast %cst_57 : f32 to vector<3x16xf32>
      %164 = arith.cmpf ogt, %162, %163 : vector<3x16xf32>
      %165 = arith.mulf %162, %162 : vector<3x16xf32>
      %cst_58 = arith.constant 0.000000e+00 : f32
      %166 = vector.broadcast %cst_58 : f32 to vector<3x16xf32>
      %167 = arith.select %164, %165, %166 : vector<3x16xi1>, vector<3x16xf32>
      %168 = vector.shape_cast %167 : vector<3x16xf32> to vector<1x3x16xf32>
      %cst_59 = arith.constant dense<0.000000e+00> : vector<1xf32>
      %169 = vector.multi_reduction <add>, %168, %cst_59 [1, 2] : vector<1x3x16xf32> to vector<1xf32>
      %170 = vector.shape_cast %169 : vector<1xf32> to vector<1x1x1xf32>
      %171 = vector.extract %170[0, 0, 0] : f32 from vector<1x1x1xf32>
      %172 = vector.broadcast %171 : f32 to vector<1x1xf32>
      %173 = arith.addf %119, %172 : vector<1x1xf32>
      %174 = arith.extui %164 : vector<3x16xi1> to vector<3x16xi32>
      %175 = arith.sitofp %174 : vector<3x16xi32> to vector<3x16xf32>
      %176 = vector.shape_cast %175 : vector<3x16xf32> to vector<1x3x16xf32>
      %cst_60 = arith.constant dense<0.000000e+00> : vector<1xf32>
      %177 = vector.multi_reduction <add>, %176, %cst_60 [1, 2] : vector<1x3x16xf32> to vector<1xf32>
      %178 = vector.shape_cast %177 : vector<1xf32> to vector<1x1x1xf32>
      %179 = vector.extract %178[0, 0, 0] : f32 from vector<1x1x1xf32>
      %180 = vector.broadcast %179 : f32 to vector<1x1xf32>
      %181 = arith.addf %127, %180 : vector<1x1xf32>
      %182 = tpu.iota {dimensions = array<i32: 1>} : vector<1x128xi32>
      %c0_i32_61 = arith.constant 0 : i32
      %183 = vector.broadcast %c0_i32_61 : i32 to vector<1x128xi32>
      %184 = arith.cmpi eq, %182, %183 : vector<1x128xi32>
      %cst_62 = arith.constant 0.000000e+00 : f32
      %185 = vector.shape_cast %152 : vector<1x1xf32> to vector<1x1xf32>
      %186 = vector.broadcast %185 : vector<1x1xf32> to vector<1x128xf32>
      %187 = vector.broadcast %cst_62 : f32 to vector<1x128xf32>
      %188 = arith.select %184, %186, %187 : vector<1x128xi1>, vector<1x128xf32>
      %c1_i32_63 = arith.constant 1 : i32
      %189 = vector.broadcast %c1_i32_63 : i32 to vector<1x128xi32>
      %190 = arith.cmpi eq, %182, %189 : vector<1x128xi32>
      %cst_64 = arith.constant 0.000000e+00 : f32
      %191 = vector.shape_cast %160 : vector<1x1xf32> to vector<1x1xf32>
      %192 = vector.broadcast %191 : vector<1x1xf32> to vector<1x128xf32>
      %193 = vector.broadcast %cst_64 : f32 to vector<1x128xf32>
      %194 = arith.select %190, %192, %193 : vector<1x128xi1>, vector<1x128xf32>
      %195 = arith.addf %188, %194 : vector<1x128xf32>
      %c2_i32_65 = arith.constant 2 : i32
      %196 = vector.broadcast %c2_i32_65 : i32 to vector<1x128xi32>
      %197 = arith.cmpi eq, %182, %196 : vector<1x128xi32>
      %cst_66 = arith.constant 0.000000e+00 : f32
      %198 = vector.shape_cast %173 : vector<1x1xf32> to vector<1x1xf32>
      %199 = vector.broadcast %198 : vector<1x1xf32> to vector<1x128xf32>
      %200 = vector.broadcast %cst_66 : f32 to vector<1x128xf32>
      %201 = arith.select %197, %199, %200 : vector<1x128xi1>, vector<1x128xf32>
      %202 = arith.addf %195, %201 : vector<1x128xf32>
      %c3_i32 = arith.constant 3 : i32
      %203 = vector.broadcast %c3_i32 : i32 to vector<1x128xi32>
      %204 = arith.cmpi eq, %182, %203 : vector<1x128xi32>
      %cst_67 = arith.constant 0.000000e+00 : f32
      %205 = vector.shape_cast %181 : vector<1x1xf32> to vector<1x1xf32>
      %206 = vector.broadcast %205 : vector<1x1xf32> to vector<1x128xf32>
      %207 = vector.broadcast %cst_67 : f32 to vector<1x128xf32>
      %208 = arith.select %204, %206, %207 : vector<1x128xi1>, vector<1x128xf32>
      %209 = arith.addf %202, %208 : vector<1x128xf32>
      %210 = vector.shape_cast %209 : vector<1x128xf32> to vector<1x1x128xf32>
      %c0_68 = arith.constant 0 : index
      %c0_69 = arith.constant 0 : index
      %c0_70 = arith.constant 0 : index
      %211 = vector.load %arg6[%c0_68, %c0_69, %c0_70] : memref<1x1x128xf32, #tpu.memory_space<vmem>>, vector<1x1x128xf32>
      tpu.vector_store %arg6[%c0_68, %c0_69, %c0_70], %210 {strides = array<i32>} : memref<1x1x128xf32, #tpu.memory_space<vmem>>, vector<1x1x128xf32>,
    } else {
    }
    return
  }
  func.func @transform_0(%arg0: i32, %arg1: i32, %arg2: i32) -> (i32, i32, i32) {
    %c0_i32 = arith.constant 0 : i32
    %c0_i32_0 = arith.constant 0 : i32
    return %arg0, %arg2, %c0_i32 : i32, i32, i32
  }
  func.func @transform_1(%arg0: i32, %arg1: i32, %arg2: i32) -> (i32, i32, i32, i32) {
    %c0_i32 = arith.constant 0 : i32
    %c0_i32_0 = arith.constant 0 : i32
    %c0_i32_1 = arith.constant 0 : i32
    return %arg0, %c0_i32, %c0_i32_0, %arg1 : i32, i32, i32, i32
  }
  func.func @transform_2(%arg0: i32, %arg1: i32, %arg2: i32) -> (i32, i32, i32, i32) {
    %c0_i32 = arith.constant 0 : i32
    %c0_i32_0 = arith.constant 0 : i32
    %c0_i32_1 = arith.constant 0 : i32
    return %arg0, %c0_i32, %c0_i32_0, %arg1 : i32, i32, i32, i32
  }
  func.func @transform_3(%arg0: i32, %arg1: i32, %arg2: i32) -> (i32, i32, i32) {
    %c0_i32 = arith.constant 0 : i32
    %c0_i32_0 = arith.constant 0 : i32
    return %arg0, %arg1, %c0_i32 : i32, i32, i32
  }
}

</mosaic_0001>

<llo_original>
// kernel: tpu_custom_call.1
$region0: #{tpu_custom_call.1}
  #allocation0 [shape = 'u32[]', space=smem, size = 0x4, offset = 0x4, fixed_abs, tag = 'smem constant byte address 0x4 - core index']
  #allocation1 [shape = 'u32[72,128]{1,0:T(1,128)}', space=vmem, size = 0x9000, scoped, tag = 'internal scratch']
  #allocation2 [shape = 'f32[8,16]{1,0:T(8,128)}', space=vmem, size = 0x1000, scoped, tag = 'scratch operand']
  %s0 = inlined_call_operand.vmem [shape: f32[2,16,3], index: 0, kind: input, shape index: {}]
  %s1 = inlined_call_operand.vmem [shape: f32[2,2,3,16], index: 1, kind: input, shape index: {}]
  %s2 = inlined_call_operand.vmem [shape: f32[2,2,3,16], index: 2, kind: input, shape index: {}]
  %s3 = inlined_call_operand.hbm [shape: f32[2,1,128], index: 3, kind: output, shape index: {}]
  %s4 = sld [smem:[#allocation0]]
  $region53: #{tpu_custom_call.1} parent=0
    _
  %s6 = ssub.s32 1, %s4
  %s7 = scalar_select 0, %s6, %s4
  $region1: #{tpu_custom_call.1} parent=0
    #allocation3 [shape = 'u8[1024]{0}', space=vmem, size = 0x400, scoped, tag = 'output window, operand 0']
    #allocation4 [shape = 's32[2]{0}', space=sflag, size = 0x8, scoped, tag = 'scoped memory for tpu_custom_call.1']
    %8 = vsyncpa [#allocation4], 0
    %s9 = scalar_lea.sflag [#allocation4], 1
    %10 = vsyncpa %s9, 0
    loop: start=0, step=1, limit=4
    $region2: #{tpu_custom_call.1} parent=1 // loop_pre_header
      _
    $region3: #{tpu_custom_call.1} parent=1 // loop_header
      %s12 = sphi 0, %s16
      %p13 = scmp.ge.s32.totalorder %s12, 4
      %s19 = sphi 0, %s38
      %s20 = sphi 0, %s34
      %s21 = sphi 0, %s30
      %s22 = sphi 0, %s19
      %s23 = sphi 0, %s20
      %s24 = sphi 0, %s21
      %s25 = sphi 0, %s22
      %s26 = sphi 0, %s23
      %s27 = sphi 0, %s24
      %s43 = sphi 0, %s45
      %s46 = sphi 0, %s43
      %s47 = sphi 0, %s46
      %s63 = sphi 0, %s47
      %s71 = sphi 0, %s73
      %s74 = sphi 0, %s71
      %s75 = sphi 0, %s74
      %s91 = sphi 0, %s75
      %s99 = sphi 0, %s101
      %s102 = sphi 0, %s99
      %s103 = sphi 0, %s102
      %s119 = sphi 0, %s103
      %s127 = sphi 0, %s129
      %s130 = sphi 0, %s127
      %s131 = sphi 0, %s130
      %s147 = sphi 0, %s131
    $region4: #{tpu_custom_call.1} parent=1 // loop_header_branch
      %15 = sbr.rel (%p13) target = $region8
    $region5: #{tpu_custom_call.1} parent=1 // loop_body
      %s17 = ssub.s32 %s12, 1
      %s18 = ssub.s32 %s12, 2
      %s28 = sadd.s32 1, %s21
      %p29 = scmp.ge.s32.totalorder %s28, 1
      %s30 = scalar_select %p29, 0, %s28
      %s31 = sadd.s32 1, %s20
      %s32 = scalar_select %p29, %s31, %s20
      %p33 = scmp.ge.s32.totalorder %s32, 1
      %s34 = scalar_select %p33, 0, %s32
      %s35 = sadd.s32 1, %s19
      %s36 = scalar_select %p33, %s35, %s19
      %p37 = scmp.ge.s32.totalorder %s36, 2
      %s38 = scalar_select %p37, 0, %s36
      %s39 = ssub.s32 %s19, %s38
      %s40 = ssub.s32 %s21, %s30
      %s41 = sor.u32 %s39, %s40
      %p42 = scmp.eq.s32.totalorder %s41, 0
      %s44 = sadd.s32 %s43, 1
      %s45 = scalar_select %p42, %s43, %s44
      %p48 = pneg %p42
      %p49 = scmp.eq.s32.totalorder %s12, 1
      %p50 = por %p48, %p49
      %p51 = scmp.ne.s32.totalorder %s43, %s46
      %p52 = scmp.eq.s32.totalorder %s12, 0
      %p53 = por %p51, %p52
      %p54 = scmp.ne.s32.totalorder %s43, %s46
      %p55 = scmp.eq.s32.totalorder %s17, 1
      %p56 = por %p54, %p55
      %p57 = scmp.ne.s32.totalorder %s46, %s47
      %p58 = scmp.eq.s32.totalorder %s17, 0
      %p59 = por %p57, %p58
      %p60 = scmp.ne.s32.totalorder %s46, %s47
      %p61 = scmp.eq.s32.totalorder %s18, 1
      %p62 = por %p60, %p61
      %p64 = scmp.ne.s32.totalorder %s47, %s63
      %p65 = scmp.eq.s32.totalorder %s18, 0
      %p66 = por %p64, %p65
      %s67 = ssub.s32 %s19, %s38
      %s68 = ssub.s32 %s20, %s34
      %s69 = sor.u32 %s67, %s68
      %p70 = scmp.eq.s32.totalorder %s69, 0
      %s72 = sadd.s32 %s71, 1
      %s73 = scalar_select %p70, %s71, %s72
      %p76 = pneg %p70
      %p77 = scmp.eq.s32.totalorder %s12, 1
      %p78 = por %p76, %p77
      %p79 = scmp.ne.s32.totalorder %s71, %s74
      %p80 = scmp.eq.s32.totalorder %s12, 0
      %p81 = por %p79, %p80
      %p82 = scmp.ne.s32.totalorder %s71, %s74
      %p83 = scmp.eq.s32.totalorder %s17, 1
      %p84 = por %p82, %p83
      %p85 = scmp.ne.s32.totalorder %s74, %s75
      %p86 = scmp.eq.s32.totalorder %s17, 0
      %p87 = por %p85, %p86
      %p88 = scmp.ne.s32.totalorder %s74, %s75
      %p89 = scmp.eq.s32.totalorder %s18, 1
      %p90 = por %p88, %p89
      %p92 = scmp.ne.s32.totalorder %s75, %s91
      %p93 = scmp.eq.s32.totalorder %s18, 0
      %p94 = por %p92, %p93
      %s95 = ssub.s32 %s19, %s38
      %s96 = ssub.s32 %s20, %s34
      %s97 = sor.u32 %s95, %s96
      %p98 = scmp.eq.s32.totalorder %s97, 0
      %s100 = sadd.s32 %s99, 1
      %s101 = scalar_select %p98, %s99, %s100
      %p104 = pneg %p98
      %p105 = scmp.eq.s32.totalorder %s12, 1
      %p106 = por %p104, %p105
      %p107 = scmp.ne.s32.totalorder %s99, %s102
      %p108 = scmp.eq.s32.totalorder %s12, 0
      %p109 = por %p107, %p108
      %p110 = scmp.ne.s32.totalorder %s99, %s102
      %p111 = scmp.eq.s32.totalorder %s17, 1
      %p112 = por %p110, %p111
      %p113 = scmp.ne.s32.totalorder %s102, %s103
      %p114 = scmp.eq.s32.totalorder %s17, 0
      %p115 = por %p113, %p114
      %p116 = scmp.ne.s32.totalorder %s102, %s103
      %p117 = scmp.eq.s32.totalorder %s18, 1
      %p118 = por %p116, %p117
      %p120 = scmp.ne.s32.totalorder %s103, %s119
      %p121 = scmp.eq.s32.totalorder %s18, 0
      %p122 = por %p120, %p121
      %s123 = ssub.s32 %s19, %s38
      %s124 = ssub.s32 %s20, %s34
      %s125 = sor.u32 %s123, %s124
      %p126 = scmp.eq.s32.totalorder %s125, 0
      %s128 = sadd.s32 %s127, 1
      %s129 = scalar_select %p126, %s127, %s128
      %p132 = pneg %p126
      %p133 = scmp.eq.s32.totalorder %s12, 1
      %p134 = por %p132, %p133
      %p135 = scmp.ne.s32.totalorder %s127, %s130
      %p136 = scmp.eq.s32.totalorder %s12, 0
      %p137 = por %p135, %p136
      %p138 = scmp.ne.s32.totalorder %s127, %s130
      %p139 = scmp.eq.s32.totalorder %s17, 1
      %p140 = por %p138, %p139
      %p141 = scmp.ne.s32.totalorder %s130, %s131
      %p142 = scmp.eq.s32.totalorder %s17, 0
      %p143 = por %p141, %p142
      %p144 = scmp.ne.s32.totalorder %s130, %s131
      %p145 = scmp.eq.s32.totalorder %s18, 1
      %p146 = por %p144, %p145
      %p148 = scmp.ne.s32.totalorder %s131, %s147
      %p149 = scmp.eq.s32.totalorder %s18, 0
      %p150 = por %p148, %p149
      %p151 = scmp.le.s32.totalorder 1, %s12
      %p152 = scmp.lt.s32.totalorder %s12, 3
      %p153 = pnand %p151, %p152
      %p154 = pneg %p153
      // Predicated region
      $region9: #{tpu_custom_call.1} parent=5 // pred_check
        _
      $region10: #{tpu_custom_call.1} parent=5 // pred_check_branch
        %156 = sbr.rel (%p153) target = $region12
      $region11: #{tpu_custom_call.1} parent=5 // pred_region
        %s157 = ssub.s32 %s12, 1
      $region12: #{tpu_custom_call.1} parent=5 // pred_fallthru
        _
      %p158 = scmp.lt.s32.totalorder %s12, 2
      // Predicated region
      $region13: #{tpu_custom_call.1} parent=5 // pred_check
        %p159 = pneg %p158
      $region14: #{tpu_custom_call.1} parent=5 // pred_check_branch
        %161 = sbr.rel (%p159) target = $region16
      $region15: #{tpu_custom_call.1} parent=5 // pred_region
        // Predicated region
        $region17: #{tpu_custom_call.1} parent=15 // pred_check
          %p162 = pneg %p53
        $region18: #{tpu_custom_call.1} parent=15 // pred_check_branch
          %164 = sbr.rel (%p162) target = $region20
        $region19: #{tpu_custom_call.1} parent=15 // pred_region
          %s165 = smul.u32 2, %s21
          %p166 = scmp.lt.s32.totalorder %s19, 1
          %s167 = scalar_select %p166, %s19, 1
          %p168 = scmp.lt.s32.totalorder %s165, 1
          %s169 = scalar_select %p168, %s165, 1
          %s170 = smul.addr %s167, 2
          %s171 = sadd.s32 %s169, %s170
          %s172 = smul.addr %s171, 8
          %s173 = scalar_lea.vmem %s0, %s172
          %s174 = smul.u32 2, %s21
        $region20: #{tpu_custom_call.1} parent=15 // pred_fallthru
          _
        // Predicated region
        $region21: #{tpu_custom_call.1} parent=15 // pred_check
          %p175 = pneg %p81
        $region22: #{tpu_custom_call.1} parent=15 // pred_check_branch
          %177 = sbr.rel (%p175) target = $region24
        $region23: #{tpu_custom_call.1} parent=15 // pred_region
          %p178 = scmp.lt.s32.totalorder %s19, 1
          %s179 = scalar_select %p178, %s19, 1
          %p180 = scmp.lt.s32.totalorder %s20, 0
          %s181 = scalar_select %p180, %s20, 0
          %s182 = smul.addr %s179, 2
          %s183 = sadd.s32 %s181, %s182
          %s184 = smul.addr %s183, 4
          %s185 = scalar_lea.vmem %s1, %s184
        $region24: #{tpu_custom_call.1} parent=15 // pred_fallthru
          _
        // Predicated region
        $region25: #{tpu_custom_call.1} parent=15 // pred_check
          %p186 = pneg %p109
        $region26: #{tpu_custom_call.1} parent=15 // pred_check_branch
          %188 = sbr.rel (%p186) target = $region28
        $region27: #{tpu_custom_call.1} parent=15 // pred_region
          %p189 = scmp.lt.s32.totalorder %s19, 1
          %s190 = scalar_select %p189, %s19, 1
          %p191 = scmp.lt.s32.totalorder %s20, 0
          %s192 = scalar_select %p191, %s20, 0
          %s193 = smul.addr %s190, 2
          %s194 = sadd.s32 %s192, %s193
          %s195 = smul.addr %s194, 4
          %s196 = scalar_lea.vmem %s2, %s195
        $region28: #{tpu_custom_call.1} parent=15 // pred_fallthru
          _
      $region16: #{tpu_custom_call.1} parent=5 // pred_fallthru
        _
      %p197 = scmp.le.s32.totalorder 1, %s12
      %p198 = scmp.lt.s32.totalorder %s12, 3
      %p199 = pnand %p197, %p198
      %p200 = pneg %p199
      // Predicated region
      $region29: #{tpu_custom_call.1} parent=5 // pred_check
        _
      $region30: #{tpu_custom_call.1} parent=5 // pred_check_branch
        %202 = sbr.rel (%p199) target = $region32
      $region31: #{tpu_custom_call.1} parent=5 // pred_region
        %s203 = ssub.s32 %s12, 1
        %s204 = smul.u32 2, %s24
        %p205 = scmp.lt.s32.totalorder %s22, 1
        %s206 = scalar_select %p205, %s22, 1
        %p207 = scmp.lt.s32.totalorder %s204, 1
        %s208 = scalar_select %p207, %s204, 1
        %s209 = smul.addr %s206, 2
        %s210 = sadd.s32 %s208, %s209
        %s211 = smul.addr %s210, 8
        %s212 = scalar_lea.vmem %s0, %s211
        %p213 = pneg %p59
        %p214 = pneg %p56
        %p215 = scmp.lt.s32.totalorder %s22, 1
        %s216 = scalar_select %p215, %s22, 1
        %p217 = scmp.lt.s32.totalorder %s23, 0
        %s218 = scalar_select %p217, %s23, 0
        %s219 = smul.addr %s216, 2
        %s220 = sadd.s32 %s218, %s219
        %s221 = smul.addr %s220, 4
        %s222 = scalar_lea.vmem %s1, %s221
        %p223 = pneg %p87
        %p224 = pneg %p84
        %p225 = scmp.lt.s32.totalorder %s22, 1
        %s226 = scalar_select %p225, %s22, 1
        %p227 = scmp.lt.s32.totalorder %s23, 0
        %s228 = scalar_select %p227, %s23, 0
        %s229 = smul.addr %s226, 2
        %s230 = sadd.s32 %s228, %s229
        %s231 = smul.addr %s230, 4
        %s232 = scalar_lea.vmem %s2, %s231
        %p233 = pneg %p115
        %p234 = pneg %p112
        %p235 = pneg %p143
        %p236 = pneg %p140
        %s237 = sand.u32 %s130, 1
        %s238 = scalar_lea.sflag [#allocation4], %s237
        %s239 = sand.u32 %s130, 1
        %s240 = scalar_lea.vmem [#allocation3], %s239
        %s241 = smul.u32 2, %s24
        %p242 = scmp.lt.s32.totalorder %s22, 1
        %s243 = scalar_select %p242, %s22, 1
        %p244 = scmp.lt.s32.totalorder %s241, 1
        %s245 = scalar_select %p244, %s241, 1
        %s246 = smul.addr %s243, 2
        %s247 = sadd.s32 %s245, %s246
        %s248 = smul.addr %s247, 8
        %s249 = scalar_lea.vmem %s0, %s248
        %s250 = smul.u32 2, %s24
        %p251 = scmp.lt.s32.totalorder %s22, 1
        %s252 = scalar_select %p251, %s22, 1
        %p253 = scmp.lt.s32.totalorder %s23, 0
        %s254 = scalar_select %p253, %s23, 0
        %s255 = smul.addr %s252, 2
        %s256 = sadd.s32 %s254, %s255
        %s257 = smul.addr %s256, 4
        %s258 = scalar_lea.vmem %s1, %s257
        %p259 = scmp.lt.s32.totalorder %s22, 1
        %s260 = scalar_select %p259, %s22, 1
        %p261 = scmp.lt.s32.totalorder %s23, 0
        %s262 = scalar_select %p261, %s23, 0
        %s263 = smul.addr %s260, 2
        %s264 = sadd.s32 %s262, %s263
        %s265 = smul.addr %s264, 4
        %s266 = scalar_lea.vmem %s2, %s265
        %p267 = scmp.eq.s32.totalorder %s24, 0
        // Predicated region
        $region33: #{tpu_custom_call.1} parent=31 // pred_check
          %p268 = pneg %p267
        $region34: #{tpu_custom_call.1} parent=31 // pred_check_branch
          %270 = sbr.rel (%p268) target = $region36
        $region35: #{tpu_custom_call.1} parent=31 // pred_region
          %vm271 = vcmask 130048
          %272 = vst.msk [vmem:[#allocation2] sm:$0xff] %vm271, 1e+30
        $region36: #{tpu_custom_call.1} parent=31 // pred_fallthru
          _
        %v273 = vld [vmem:[%s258] sm:$0x7]
        %v274 = vld [vmem:[#allocation2] sm:$0xff]
        %v275 = vld [vmem:[%s249] sm:$0xff]
        %277 = vset.pattern.permute.xlu0 0
        %278 = vperm.xlu0 %277, %v275
        %v279 = vpop.permute.xlu0 %278
        %v281 = vperm.slane %v273, 0
        %v282 = vsub.f32 %v279, %v281
        %v283 = vmul.f32 %v282, %v282
        %284 = vset.pattern.permute.xlu0 1
        %285 = vperm.xlu0 %284, %v275
        %v286 = vpop.permute.xlu0 %285
        %v288 = vperm.slane %v273, 1
        %v289 = vsub.f32 %v286, %v288
        %v290 = vmul.f32 %v289, %v289
        %v291 = vadd.f32 %v283, %v290
        %292 = vset.pattern.permute.xlu0 2
        %293 = vperm.xlu0 %292, %v275
        %v294 = vpop.permute.xlu0 %293
        %v296 = vperm.slane %v273, 2
        %v297 = vsub.f32 %v294, %v296
        %v298 = vmul.f32 %v297, %v297
        %v299 = vadd.f32 %v291, %v298
        %v300 = vmin.f32 %v274, %v299
        %s301 = scalar_lea.vmem %s249, 8
        %v302 = vld [vmem:[%s301] sm:$0xff]
        %304 = vset.pattern.permute.xlu0 0
        %305 = vperm.xlu0 %304, %v302
        %v306 = vpop.permute.xlu0 %305
        %v308 = vsub.f32 %v306, %v281
        %v309 = vmul.f32 %v308, %v308
        %310 = vset.pattern.permute.xlu0 1
        %311 = vperm.xlu0 %310, %v302
        %v312 = vpop.permute.xlu0 %311
        %v314 = vsub.f32 %v312, %v288
        %v315 = vmul.f32 %v314, %v314
        %v316 = vadd.f32 %v309, %v315
        %317 = vset.pattern.permute.xlu0 2
        %318 = vperm.xlu0 %317, %v302
        %v319 = vpop.permute.xlu0 %318
        %v321 = vsub.f32 %v319, %v296
        %v322 = vmul.f32 %v321, %v321
        %v323 = vadd.f32 %v316, %v322
        %v324 = vmin.f32 %v300, %v323
        %vm325 = vcmask 130048
        %326 = vst.msk [vmem:[#allocation2] sm:$0xff] %vm325, %v324
        // Predicated region
        $region37: #{tpu_custom_call.1} parent=31 // pred_check
          %p327 = pneg %p267
        $region38: #{tpu_custom_call.1} parent=31 // pred_check_branch
          %329 = sbr.rel (%p327) target = $region40
        $region39: #{tpu_custom_call.1} parent=31 // pred_region
          %v330 = vld [vmem:[#allocation2] sm:$0xff]
          %v331 = vsel %vm325, %v330, inf
          %v332 = vrot.slane %v331, 4
          %v333 = vmin.f32 %v331, %v332
          %v334 = vrot.slane %v333, 2
          %v335 = vmin.f32 %v333, %v334
          %v336 = vrot.slane %v335, 1
          %v337 = vmin.f32 %v335, %v336
          %vm338 = vcmp.lt.f32.partialorder %v337, 0.1
          %v339 = vsel %vm338, 1, 0
          %v340 = vcvt.s32.f32 %v339
          %vm341 = vcmp.gt.f32.partialorder %v337, 0.2
          %v342 = vsel %vm341, 1, 0
          %v343 = vcvt.s32.f32 %v342
          %v344 = vld [vmem:[%s258] sm:$0x7]
          %v345 = vld [vmem:[%s266] sm:$0x7]
          %v346 = vsub.f32 %v345, %v344
          %v347 = vmul.f32 %v346, %v340
          %v348 = vmul.f32 %v347, %v347
          %vm349 = vcmask 124928
          %v350 = vsel %vm349, %v348, 0.0
          %v351 = vrot.slane %v350, 4
          %v352 = vadd.f32 %v350, %v351
          %v353 = vrot.slane %v352, 2
          %v354 = vadd.f32 %v352, %v353
          %v355 = vrot.slane %v354, 1
          %v356 = vadd.f32 %v354, %v355
          %v357 = vrsqrt.pop %v356
          %v358 = vmul.f32 %v357, %v356
          %v359 = vmul.f32 %v358, %v357
          %v360 = vmul.f32 0.5, %v359
          %v361 = vsub.f32 1.5, %v360
          %v362 = vmul.f32 %v357, %v361
          %v363 = vmul.f32 %v356, %v362
          %vm364 = vcmp.eq.f32.partialorder %v356, inf
          %v365 = vsel %vm364, %v356, %v363
          %vm366 = vcmp.eq.f32.partialorder %v356, 0.0
          %v367 = vand.u32 %v356, 2147483648
          %v368 = vsel %vm366, %v367, %v365
          %vm369 = vcmp.gt.f32.partialorder %v368, 0.0
          %v370 = vsub.f32 0.05, %v368
          %v371 = vmax.f32 %v370, 0.0
          %v372 = vsel %vm369, %v371, 0.0
          %vm373 = vcmask 122880
          %v374 = vsel %vm373, %v372, 0.0
          %375 = vadd.xlane.f32.xlu0 %v374
          %v376 = vpop.xlane.xlu0 %375
          %v377 = vrot.slane %v376, 4
          %v378 = vadd.f32 %v376, %v377
          %v379 = vrot.slane %v378, 2
          %v380 = vadd.f32 %v378, %v379
          %v381 = vrot.slane %v380, 1
          %v382 = vadd.f32 %v380, %v381
          %s383 = vtos %v382
          %v384 = vstv %s383
          %v385 = vadd.f32 %v384, 0.0
          %v386 = vsel %vm369, 1, 0
          %v387 = vcvt.s32.f32 %v386
          %v388 = vsel %vm373, %v387, 0.0
          %389 = vadd.xlane.f32.xlu0 %v388
          %v390 = vpop.xlane.xlu0 %389
          %v391 = vrot.slane %v390, 4
          %v392 = vadd.f32 %v390, %v391
          %v393 = vrot.slane %v392, 2
          %v394 = vadd.f32 %v392, %v393
          %v395 = vrot.slane %v394, 1
          %v396 = vadd.f32 %v394, %v395
          %s397 = vtos %v396
          %v398 = vstv %s397
          %v399 = vadd.f32 %v398, 0.0
          %v400 = vmul.f32 %v346, %v343
          %vm401 = vcmp.gt.f32.partialorder %v400, 0.0
          %v402 = vmul.f32 %v400, %v400
          %v403 = vsel %vm401, %v402, 0.0
          %v404 = vsel %vm349, %v403, 0.0
          %405 = vadd.xlane.f32.xlu0 %v404
          %v406 = vpop.xlane.xlu0 %405
          %v407 = vrot.slane %v406, 4
          %v408 = vadd.f32 %v406, %v407
          %v409 = vrot.slane %v408, 2
          %v410 = vadd.f32 %v408, %v409
          %v411 = vrot.slane %v410, 1
          %v412 = vadd.f32 %v410, %v411
          %s413 = vtos %v412
          %v414 = vstv %s413
          %v415 = vadd.f32 %v414, 0.0
          %v416 = vsel %vm401, 1, 0
          %v417 = vcvt.s32.f32 %v416
          %v418 = vsel %vm349, %v417, 0.0
          %419 = vadd.xlane.f32.xlu0 %v418
          %v420 = vpop.xlane.xlu0 %419
          %v421 = vrot.slane %v420, 4
          %v422 = vadd.f32 %v420, %v421
          %v423 = vrot.slane %v422, 2
          %v424 = vadd.f32 %v422, %v423
          %v425 = vrot.slane %v424, 1
          %v426 = vadd.f32 %v424, %v425
          %s427 = vtos %v426
          %v428 = vstv %s427
          %v429 = vadd.f32 %v428, 0.0
          %s430 = scalar_lea.vmem %s258, 4
          %v431 = vld [vmem:[%s430] sm:$0x7]
          %s432 = scalar_lea.vmem %s266, 4
          %v433 = vld [vmem:[%s432] sm:$0x7]
          %v434 = vsub.f32 %v433, %v431
          %v435 = vmul.f32 %v434, %v340
          %v436 = vmul.f32 %v435, %v435
          %v437 = vsel %vm349, %v436, 0.0
          %v438 = vrot.slane %v437, 4
          %v439 = vadd.f32 %v437, %v438
          %v440 = vrot.slane %v439, 2
          %v441 = vadd.f32 %v439, %v440
          %v442 = vrot.slane %v441, 1
          %v443 = vadd.f32 %v441, %v442
          %v444 = vrsqrt.pop %v443
          %v445 = vmul.f32 %v444, %v443
          %v446 = vmul.f32 %v445, %v444
          %v447 = vmul.f32 0.5, %v446
          %v448 = vsub.f32 1.5, %v447
          %v449 = vmul.f32 %v444, %v448
          %v450 = vmul.f32 %v443, %v449
          %vm451 = vcmp.eq.f32.partialorder %v443, inf
          %v452 = vsel %vm451, %v443, %v450
          %vm453 = vcmp.eq.f32.partialorder %v443, 0.0
          %v454 = vand.u32 %v443, 2147483648
          %v455 = vsel %vm453, %v454, %v452
          %vm456 = vcmp.gt.f32.partialorder %v455, 0.0
          %v457 = vsub.f32 0.05, %v455
          %v458 = vmax.f32 %v457, 0.0
          %v459 = vsel %vm456, %v458, 0.0
          %v460 = vsel %vm373, %v459, 0.0
          %461 = vadd.xlane.f32.xlu0 %v460
          %v462 = vpop.xlane.xlu0 %461
          %v463 = vrot.slane %v462, 4
          %v464 = vadd.f32 %v462, %v463
          %v465 = vrot.slane %v464, 2
          %v466 = vadd.f32 %v464, %v465
          %v467 = vrot.slane %v466, 1
          %v468 = vadd.f32 %v466, %v467
          %s469 = vtos %v468
          %v470 = vstv %s469
          %v471 = vadd.f32 %v385, %v470
          %v472 = vsel %vm456, 1, 0
          %v473 = vcvt.s32.f32 %v472
          %v474 = vsel %vm373, %v473, 0.0
          %475 = vadd.xlane.f32.xlu0 %v474
          %v476 = vpop.xlane.xlu0 %475
          %v477 = vrot.slane %v476, 4
          %v478 = vadd.f32 %v476, %v477
          %v479 = vrot.slane %v478, 2
          %v480 = vadd.f32 %v478, %v479
          %v481 = vrot.slane %v480, 1
          %v482 = vadd.f32 %v480, %v481
          %s483 = vtos %v482
          %v484 = vstv %s483
          %v485 = vadd.f32 %v399, %v484
          %v486 = vmul.f32 %v434, %v343
          %vm487 = vcmp.gt.f32.partialorder %v486, 0.0
          %v488 = vmul.f32 %v486, %v486
          %v489 = vsel %vm487, %v488, 0.0
          %v490 = vsel %vm349, %v489, 0.0
          %491 = vadd.xlane.f32.xlu0 %v490
          %v492 = vpop.xlane.xlu0 %491
          %v493 = vrot.slane %v492, 4
          %v494 = vadd.f32 %v492, %v493
          %v495 = vrot.slane %v494, 2
          %v496 = vadd.f32 %v494, %v495
          %v497 = vrot.slane %v496, 1
          %v498 = vadd.f32 %v496, %v497
          %s499 = vtos %v498
          %v500 = vstv %s499
          %v501 = vadd.f32 %v415, %v500
          %v502 = vsel %vm487, 1, 0
          %v503 = vcvt.s32.f32 %v502
          %v504 = vsel %vm349, %v503, 0.0
          %505 = vadd.xlane.f32.xlu0 %v504
          %v506 = vpop.xlane.xlu0 %505
          %v507 = vrot.slane %v506, 4
          %v508 = vadd.f32 %v506, %v507
          %v509 = vrot.slane %v508, 2
          %v510 = vadd.f32 %v508, %v509
          %v511 = vrot.slane %v510, 1
          %v512 = vadd.f32 %v510, %v511
          %s513 = vtos %v512
          %v514 = vstv %s513
          %v515 = vadd.f32 %v429, %v514
          %v516 = vlaneseq
          %v517 = vand.u32 %v516, 127
          %vm518 = vcmp.eq.s32.totalorder %v517, 0
          %v519 = vsel %vm518, %v471, 0.0
          %vm520 = vcmp.eq.s32.totalorder %v517, 1
          %v521 = vsel %vm520, %v485, 0.0
          %v522 = vadd.f32 %v519, %v521
          %vm523 = vcmp.eq.s32.totalorder %v517, 2
          %v524 = vsel %vm523, %v501, 0.0
          %v525 = vadd.f32 %v522, %v524
          %vm526 = vcmp.eq.s32.totalorder %v517, 3
          %v527 = vsel %vm526, %v515, 0.0
          %v528 = vadd.f32 %v525, %v527
          %529 = vst [vmem:[%s240] sm:$0x1] %v528
        $region40: #{tpu_custom_call.1} parent=31 // pred_fallthru
          _
        %s530 = sand.u32 %s130, 1
        %s531 = scalar_lea.sflag [#allocation4], %s530
        %s532 = sand.u32 %s130, 1
        %s533 = scalar_lea.vmem [#allocation3], %s532
        // Predicated region
        $region41: #{tpu_custom_call.1} parent=31 // pred_check
          %p534 = pneg %p140
        $region42: #{tpu_custom_call.1} parent=31 // pred_check_branch
          %536 = sbr.rel (%p534) target = $region44
        $region43: #{tpu_custom_call.1} parent=31 // pred_region
          %538 = vsyncadd %s531, 0
          %s539 = sadd.s32 %s23, %s22
          %s540 = scalar_lea.hbm %s3, %s539
          %s542 = sshll.u32 %s533, 4
          %s543 = int_to_ptr.vmem [resolvable:$true] %s542
          %s544 = sshll.u32 %s540, 4
          %s545 = int_to_ptr.hbm [resolvable:$true] %s544
          %547 = dma.vmem_to_hbm [thread:$0]  %s543, 16, %s545, %s531
        $region44: #{tpu_custom_call.1} parent=31 // pred_fallthru
          _
      $region32: #{tpu_custom_call.1} parent=5 // pred_fallthru
        _
      %p548 = scmp.le.s32.totalorder 2, %s12
      // Predicated region
      $region45: #{tpu_custom_call.1} parent=5 // pred_check
        %p549 = pneg %p548
      $region46: #{tpu_custom_call.1} parent=5 // pred_check_branch
        %551 = sbr.rel (%p549) target = $region48
      $region47: #{tpu_custom_call.1} parent=5 // pred_region
        %s552 = ssub.s32 %s12, 2
        // Predicated region
        $region49: #{tpu_custom_call.1} parent=47 // pred_check
          %p553 = pneg %p146
        $region50: #{tpu_custom_call.1} parent=47 // pred_check_branch
          %555 = sbr.rel (%p553) target = $region52
        $region51: #{tpu_custom_call.1} parent=47 // pred_region
          %s556 = sand.u32 %s131, 1
          %s557 = scalar_lea.sflag [#allocation4], %s556
          %s558 = sand.u32 %s131, 1
          %s559 = scalar_lea.vmem [#allocation3], %s558
          %561 = dma.done %s557, 16
        $region52: #{tpu_custom_call.1} parent=47 // pred_fallthru
          _
      $region48: #{tpu_custom_call.1} parent=5 // pred_fallthru
        _
    $region6: #{tpu_custom_call.1} parent=1 // loop_footer
      %s16 = sadd.s32 1, %s12
    $region7: #{tpu_custom_call.1} parent=1 // loop_footer_branch
      %11 = sbr.rel target = $region3
    $region8: #{tpu_custom_call.1} parent=1 // loop_exit
      _
    %562 = vsyncpa [#allocation4], 1
    %s563 = scalar_lea.sflag [#allocation4], 1
    %564 = vsyncpa %s563, 1

</llo_original>
